<compile_context>
chip_gen: v6e
topology: v6e:2x2x1
jax: 0.10.0
libtpu: 0.0.40
codegen_flags: <defaults>
</compile_context>

<pallas_src>
import math

import jax
import jax.numpy as jnp
from jax.experimental import pallas as pl
from jax.experimental.pallas import tpu as pltpu

_LANE = 128


def _sublane_multiple(dtype) -> int:
    itemsize = jnp.dtype(dtype).itemsize
    return max(8, 32 // max(1, itemsize))      # f32: 8, bf16: 16, int8/fp8: 32


def _vmem_ceiling_bytes() -> int:
    """Conservative per-core VMEM budget, generation-aware when queryable."""
    cap = 64 << 20                             # v7x per-TensorCore VMEM
    try:
        info = pltpu.get_tpu_info()
        cap = int(getattr(info, "vmem_capacity_bytes", cap)) or cap
    except Exception:
        pass
    return min((cap * 3) // 4, 96 << 20)


def _make_dice_kernel(t_rows, acc_rows, k_per, num_tiles, valid_rows):
    """Kernel body for one (split, n, c, spatial_tile) grid point."""
    groups = t_rows // acc_rows
    has_partial_tile = num_tiles * t_rows > valid_rows

    def kernel(pred_ref, gt_ref, inter_ref, union_ref):
        s = pl.program_id(0)
        k = pl.program_id(3)

        @pl.when(k == 0)
        def _init():
            inter_ref[...] = jnp.zeros_like(inter_ref)
            union_ref[...] = jnp.zeros_like(union_ref)

        p = pred_ref[...]                       # (t_rows, 128), native dtype
        g = gt_ref[...]
        # Products in the native dtype (bf16 VALU on v6e/v7x); widen to f32
        # only for the accumulation.
        inter = (p * g).astype(jnp.float32)
        union = (p * p + g).astype(jnp.float32)

        def accumulate(iv, uv):
            # Layout-free reshape (splits the sublane axis by its tile
            # multiple); the sum over groups is whole-vreg VALU adds.
            inter_ref[...] += iv.reshape(groups, acc_rows, _LANE).sum(axis=0)
            union_ref[...] += uv.reshape(groups, acc_rows, _LANE).sum(axis=0)

        if not has_partial_tile:
            accumulate(inter, union)
        else:
            k_glob = s * k_per + k
            is_last = k_glob == num_tiles - 1

            @pl.when(jnp.logical_not(is_last))
            def _full_tile():
                accumulate(inter, union)

            @pl.when(is_last)
            def _masked_tile():
                # Boundary block: rows past `valid_rows` hold unspecified
                # data and must not touch the accumulators.
                row = jax.lax.broadcasted_iota(jnp.int32, (t_rows, 1), 0)
                ok = (k_glob * t_rows + row) < valid_rows
                accumulate(jnp.where(ok, inter, 0.0),
                           jnp.where(ok, union, 0.0))

    return kernel


def dice_loss_separate(x, y, index=0, *, spatial_tile_rows=None):
    """JAX/Pallas equivalent of Dice_loss_separate.forward (scalar f32)."""
    xi = x[index]
    yi = y[index]
    assert xi.shape == yi.shape
    N, C, H, W, D = xi.shape
    assert C >= 2, "Dice_loss_separate drops channel 0; need C >= 2."
    S = H * W * D

    if yi.dtype != xi.dtype:
        yi = yi.astype(xi.dtype)
    dtype = xi.dtype
    itemsize = jnp.dtype(dtype).itemsize
    sub = _sublane_multiple(dtype)

    pred = xi.reshape(N, C, S)                 # free: contiguous view
    gt = yi.reshape(N, C, S)

    if S % _LANE == 0:
        # Copy-free path: pure reshape view; channel 0 is dropped by the
        # index_map below and is never read from HBM.
        rows = S // _LANE
        c_off = 1
        pred4 = pred.reshape(N, C, rows, _LANE)
        gt4 = gt.reshape(N, C, rows, _LANE)
    else:
        # TODO(synk): rare fallback (H*W*D not a multiple of 128) pays one
        # HBM copy of channels 1: to zero-pad the lane axis (exact for this
        # loss); a fully copy-free ragged path would need manual DMA.
        rows = -(-S // _LANE)
        pad = rows * _LANE - S
        pred4 = jnp.pad(pred[:, 1:], ((0, 0), (0, 0), (0, pad)))
        gt4 = jnp.pad(gt[:, 1:], ((0, 0), (0, 0), (0, pad)))
        pred4 = pred4.reshape(N, C - 1, rows, _LANE)
        gt4 = gt4.reshape(N, C - 1, rows, _LANE)
        c_off = 0

    # ---- Tile-size selection (fits 2 inputs x 2 pipeline buffers) --------
    ceiling = _vmem_ceiling_bytes()
    bytes_per_row = _LANE * itemsize
    budget_rows = max(sub,
                      (((ceiling - (8 << 20)) // (4 * bytes_per_row)) // sub) * sub)
    if spatial_tile_rows is None:
        spatial_tile_rows = (4 << 20) // bytes_per_row     # ~4 MiB per input
    t_target = max(sub, min(int(spatial_tile_rows), budget_rows))

    if rows <= sub or (rows % sub == 0 and rows <= t_target):
        t_rows = rows                          # single full-extent block
    else:
        t_rows = max(sub, min((t_target // sub) * sub, (rows // sub) * sub))

    num_tiles = -(-rows // t_rows)
    acc_rows = math.gcd(t_rows, 8)

    # Split the spatial reduction in two when there is not enough (n, c)
    # parallelism to occupy both v7x TensorCores (no effect on v5e/v6e).
    n_split = 2 if (N * (C - 1) < 8 and num_tiles >= 2
                    and num_tiles % 2 == 0) else 1
    k_per = num_tiles // n_split

    grid = (n_split, N, C - 1, k_per)
    in_spec = pl.BlockSpec(
        (None, None, t_rows, _LANE),
        lambda s, n, c, k: (n, c + c_off, s * k_per + k, 0))
    out_spec = pl.BlockSpec(
        (None, None, None, acc_rows, _LANE),
        lambda s, n, c, k: (s, n, c, 0, 0))
    part_shape = jax.ShapeDtypeStruct((n_split, N, C - 1, acc_rows, _LANE),
                                      jnp.float32)

    tile_bytes = t_rows * bytes_per_row
    vmem_limit = int(min(ceiling, max(4 * tile_bytes + (8 << 20), 24 << 20)))

    work = N * (C - 1) * S
    cost = pl.CostEstimate(flops=5 * work, transcendentals=0,
                           bytes_accessed=2 * work * itemsize)

    kernel = _make_dice_kernel(t_rows, acc_rows, k_per, num_tiles, rows)

    inter_part, union_part = pl.pallas_call(
        kernel,
        out_shape=(part_shape, part_shape),
        grid_spec=pltpu.PrefetchScalarGridSpec(
            num_scalar_prefetch=0,
            grid=grid,
            in_specs=[in_spec, in_spec],
            out_specs=[out_spec, out_spec],
        ),
        compiler_params=pltpu.CompilerParams(
            dimension_semantics=("parallel", "parallel", "parallel",
                                 "arbitrary"),
            vmem_limit_bytes=vmem_limit,
        ),
        cost_estimate=cost,
    )(pred4, gt4)

    # Tiny epilogue: (split, N, C-1, acc_rows, 128) -> (N, C-1) -> scalar.
    intersection = jnp.sum(inter_part, axis=(0, 3, 4))
    union = jnp.sum(union_part, axis=(0, 3, 4))
    dice = (2.0 * intersection + 1.0) / (union + 1.0)
    return 1.0 - jnp.mean(dice)


def _dice_loss_ref(x, y, index=0):
    """Pure-JAX reference for correctness checking."""
    xi, yi = x[index], y[index]
    N, C = xi.shape[0], xi.shape[1]
    pred = xi.reshape(N, C, -1)[:, 1:].astype(jnp.float32)
    gt = yi.reshape(N, C, -1)[:, 1:].astype(jnp.float32)
    inter = jnp.sum(pred * gt, axis=2)
    union = jnp.sum(pred ** 2 + gt, axis=2)
    dice = (2.0 * inter + 1.0) / (union + 1.0)
    return 1.0 - jnp.mean(dice)


if __name__ == "__main__":
    key = jax.random.PRNGKey(0)
    ks = jax.random.split(key, 12)

    def run_case(k1, k2, shape, dtype=jnp.float32, tol=1e-5, **kwargs):
        a = jax.random.uniform(k1, shape, dtype=jnp.float32).astype(dtype)
        b = jax.random.uniform(k2, shape, dtype=jnp.float32).astype(dtype)
        x, y = (a,), (b,)
        got = jax.block_until_ready(dice_loss_separate(x, y, index=0, **kwargs))
        want = _dice_loss_ref(x, y, index=0)
        assert jnp.allclose(got, want, atol=tol, rtol=tol), (shape, dtype, got, want)

    # 1. Single full-extent tile, rows < 8 (S = 512), copy-free path.
    run_case(ks[0], ks[1], (2, 4, 8, 8, 8))
    # 2. Multi-tile spatial reduction (accumulation over the arbitrary axis).
    run_case(ks[2], ks[3], (2, 4, 8, 8, 32), spatial_tile_rows=8)
    # 3. Ragged last row-tile -> in-kernel masking (rows=24, tile=16) + split.
    run_case(ks[4], ks[5], (2, 3, 8, 8, 48), spatial_tile_rows=16)
    # 4. Tiny N*(C-1): reduction split keeps both v7x TensorCores busy.
    run_case(ks[6], ks[7], (1, 2, 8, 8, 64), spatial_tile_rows=8)
    # 5. bf16 inputs (native-dtype products, f32 accumulation).
    run_case(ks[8], ks[9], (2, 3, 8, 8, 32), dtype=jnp.bfloat16, tol=5e-3)
    # 6. H*W*D not a multiple of 128 -> exact zero-pad fallback path.
    run_case(ks[10], ks[11], (2, 3, 5, 5, 5))

    print("KERNEL_OK")
</pallas_src>

<mosaic_0001>
module attributes {stable_mosaic.version = 11 : i64} {
  func.func @kernel(%arg0: i32, %arg1: i32, %arg2: i32, %arg3: i32, %arg4: memref<1x1x4x128xf32, #tpu.memory_space<vmem>>, %arg5: memref<1x1x4x128xf32, #tpu.memory_space<vmem>>, %arg6: memref<1x1x1x4x128xf32, #tpu.memory_space<vmem>>, %arg7: memref<1x1x1x4x128xf32, #tpu.memory_space<vmem>>) attributes {dimension_semantics = [#tpu.dimension_semantics<parallel>, #tpu.dimension_semantics<parallel>, #tpu.dimension_semantics<parallel>, #tpu.dimension_semantics<arbitrary>], iteration_bounds = array<i64: 1, 2, 3, 1>, scalar_prefetch = 0 : i64, scratch_operands = 0 : i64, tpu.core_type = #tpu.core_type<tc>, window_params = [{transform_indices = @transform_0, window_bounds = array<i64: 1, 1, 4, 128>}, {transform_indices = @transform_1, window_bounds = array<i64: 1, 1, 4, 128>}, {transform_indices = @transform_2, window_bounds = array<i64: 1, 1, 1, 4, 128>}, {transform_indices = @transform_3, window_bounds = array<i64: 1, 1, 1, 4, 128>}]} {
    %c0_i32 = arith.constant 0 : i32
    %0 = arith.cmpi eq, %arg3, %c0_i32 : i32
    %1 = arith.extui %0 : i1 to i32
    %c0_i32_0 = arith.constant 0 : i32
    %2 = arith.cmpi ne, %1, %c0_i32_0 : i32
    scf.if %2 {
      %cst_29 = arith.constant 0.000000e+00 : f32
      %26 = vector.broadcast %cst_29 : f32 to vector<4x128xf32>
      %c0_30 = arith.constant 0 : index
      %c0_31 = arith.constant 0 : index
      %c0_32 = arith.constant 0 : index
      %c0_33 = arith.constant 0 : index
      %c0_34 = arith.constant 0 : index
      %27 = vector.load %arg6[%c0_30, %c0_31, %c0_32, %c0_33, %c0_34] : memref<1x1x1x4x128xf32, #tpu.memory_space<vmem>>, vector<1x1x1x4x128xf32>
      %28 = vector.shape_cast %27 : vector<1x1x1x4x128xf32> to vector<4x128xf32>
      %29 = vector.shape_cast %26 : vector<4x128xf32> to vector<1x1x1x4x128xf32>
      tpu.vector_store %arg6[%c0_30, %c0_31, %c0_32, %c0_33, %c0_34], %29 {strides = array<i32>} : memref<1x1x1x4x128xf32, #tpu.memory_space<vmem>>, vector<1x1x1x4x128xf32>,
      %cst_35 = arith.constant 0.000000e+00 : f32
      %30 = vector.broadcast %cst_35 : f32 to vector<4x128xf32>
      %c0_36 = arith.constant 0 : index
      %c0_37 = arith.constant 0 : index
      %c0_38 = arith.constant 0 : index
      %c0_39 = arith.constant 0 : index
      %c0_40 = arith.constant 0 : index
      %31 = vector.load %arg7[%c0_36, %c0_37, %c0_38, %c0_39, %c0_40] : memref<1x1x1x4x128xf32, #tpu.memory_space<vmem>>, vector<1x1x1x4x128xf32>
      %32 = vector.shape_cast %31 : vector<1x1x1x4x128xf32> to vector<4x128xf32>
      %33 = vector.shape_cast %30 : vector<4x128xf32> to vector<1x1x1x4x128xf32>
      tpu.vector_store %arg7[%c0_36, %c0_37, %c0_38, %c0_39, %c0_40], %33 {strides = array<i32>} : memref<1x1x1x4x128xf32, #tpu.memory_space<vmem>>, vector<1x1x1x4x128xf32>,
    } else {
    }
    %c0 = arith.constant 0 : index
    %c0_1 = arith.constant 0 : index
    %c0_2 = arith.constant 0 : index
    %c0_3 = arith.constant 0 : index
    %3 = vector.load %arg4[%c0, %c0_1, %c0_2, %c0_3] : memref<1x1x4x128xf32, #tpu.memory_space<vmem>>, vector<1x1x4x128xf32>
    %4 = vector.shape_cast %3 : vector<1x1x4x128xf32> to vector<4x128xf32>
    %c0_4 = arith.constant 0 : index
    %c0_5 = arith.constant 0 : index
    %c0_6 = arith.constant 0 : index
    %c0_7 = arith.constant 0 : index
    %5 = vector.load %arg5[%c0_4, %c0_5, %c0_6, %c0_7] : memref<1x1x4x128xf32, #tpu.memory_space<vmem>>, vector<1x1x4x128xf32>
    %6 = vector.shape_cast %5 : vector<1x1x4x128xf32> to vector<4x128xf32>
    %7 = arith.mulf %4, %6 : vector<4x128xf32>
    %8 = arith.mulf %4, %4 : vector<4x128xf32>
    %9 = arith.addf %8, %6 : vector<4x128xf32>
    %c0_8 = arith.constant 0 : index
    %c0_9 = arith.constant 0 : index
    %c0_10 = arith.constant 0 : index
    %c0_11 = arith.constant 0 : index
    %c0_12 = arith.constant 0 : index
    %10 = vector.load %arg6[%c0_8, %c0_9, %c0_10, %c0_11, %c0_12] : memref<1x1x1x4x128xf32, #tpu.memory_space<vmem>>, vector<1x1x1x4x128xf32>
    %11 = vector.shape_cast %10 : vector<1x1x1x4x128xf32> to vector<4x128xf32>
    %12 = vector.shape_cast %7 : vector<4x128xf32> to vector<1x4x128xf32>
    %cst = arith.constant dense<0.000000e+00> : vector<4x128xf32>
    %13 = vector.multi_reduction <add>, %12, %cst [0] : vector<1x4x128xf32> to vector<4x128xf32>
    %14 = arith.addf %11, %13 : vector<4x128xf32>
    %c0_13 = arith.constant 0 : index
    %c0_14 = arith.constant 0 : index
    %c0_15 = arith.constant 0 : index
    %c0_16 = arith.constant 0 : index
    %c0_17 = arith.constant 0 : index
    %15 = vector.load %arg6[%c0_13, %c0_14, %c0_15, %c0_16, %c0_17] : memref<1x1x1x4x128xf32, #tpu.memory_space<vmem>>, vector<1x1x1x4x128xf32>
    %16 = vector.shape_cast %15 : vector<1x1x1x4x128xf32> to vector<4x128xf32>
    %17 = vector.shape_cast %14 : vector<4x128xf32> to vector<1x1x1x4x128xf32>
    tpu.vector_store %arg6[%c0_13, %c0_14, %c0_15, %c0_16, %c0_17], %17 {strides = array<i32>} : memref<1x1x1x4x128xf32, #tpu.memory_space<vmem>>, vector<1x1x1x4x128xf32>,
    %c0_18 = arith.constant 0 : index
    %c0_19 = arith.constant 0 : index
    %c0_20 = arith.constant 0 : index
    %c0_21 = arith.constant 0 : index
    %c0_22 = arith.constant 0 : index
    %18 = vector.load %arg7[%c0_18, %c0_19, %c0_20, %c0_21, %c0_22] : memref<1x1x1x4x128xf32, #tpu.memory_space<vmem>>, vector<1x1x1x4x128xf32>
    %19 = vector.shape_cast %18 : vector<1x1x1x4x128xf32> to vector<4x128xf32>
    %20 = vector.shape_cast %9 : vector<4x128xf32> to vector<1x4x128xf32>
    %cst_23 = arith.constant dense<0.000000e+00> : vector<4x128xf32>
    %21 = vector.multi_reduction <add>, %20, %cst_23 [0] : vector<1x4x128xf32> to vector<4x128xf32>
    %22 = arith.addf %19, %21 : vector<4x128xf32>
    %c0_24 = arith.constant 0 : index
    %c0_25 = arith.constant 0 : index
    %c0_26 = arith.constant 0 : index
    %c0_27 = arith.constant 0 : index
    %c0_28 = arith.constant 0 : index
    %23 = vector.load %arg7[%c0_24, %c0_25, %c0_26, %c0_27, %c0_28] : memref<1x1x1x4x128xf32, #tpu.memory_space<vmem>>, vector<1x1x1x4x128xf32>
    %24 = vector.shape_cast %23 : vector<1x1x1x4x128xf32> to vector<4x128xf32>
    %25 = vector.shape_cast %22 : vector<4x128xf32> to vector<1x1x1x4x128xf32>
    tpu.vector_store %arg7[%c0_24, %c0_25, %c0_26, %c0_27, %c0_28], %25 {strides = array<i32>} : memref<1x1x1x4x128xf32, #tpu.memory_space<vmem>>, vector<1x1x1x4x128xf32>,
    return
  }
  func.func @transform_0(%arg0: i32, %arg1: i32, %arg2: i32, %arg3: i32) -> (i32, i32, i32, i32) {
    %c1_i32 = arith.constant 1 : i32
    %0 = arith.addi %arg2, %c1_i32 : i32
    %c1_i32_0 = arith.constant 1 : i32
    %1 = arith.muli %arg0, %c1_i32_0 : i32
    %2 = arith.addi %1, %arg3 : i32
    %c0_i32 = arith.constant 0 : i32
    %c0_i32_1 = arith.constant 0 : i32
    return %arg1, %0, %2, %c0_i32 : i32, i32, i32, i32
  }
  func.func @transform_1(%arg0: i32, %arg1: i32, %arg2: i32, %arg3: i32) -> (i32, i32, i32, i32) {
    %c1_i32 = arith.constant 1 : i32
    %0 = arith.addi %arg2, %c1_i32 : i32
    %c1_i32_0 = arith.constant 1 : i32
    %1 = arith.muli %arg0, %c1_i32_0 : i32
    %2 = arith.addi %1, %arg3 : i32
    %c0_i32 = arith.constant 0 : i32
    %c0_i32_1 = arith.constant 0 : i32
    return %arg1, %0, %2, %c0_i32 : i32, i32, i32, i32
  }
  func.func @transform_2(%arg0: i32, %arg1: i32, %arg2: i32, %arg3: i32) -> (i32, i32, i32, i32, i32) {
    %c0_i32 = arith.constant 0 : i32
    %c0_i32_0 = arith.constant 0 : i32
    %c0_i32_1 = arith.constant 0 : i32
    return %arg0, %arg1, %arg2, %c0_i32, %c0_i32_0 : i32, i32, i32, i32, i32
  }
  func.func @transform_3(%arg0: i32, %arg1: i32, %arg2: i32, %arg3: i32) -> (i32, i32, i32, i32, i32) {
    %c0_i32 = arith.constant 0 : i32
    %c0_i32_0 = arith.constant 0 : i32
    %c0_i32_1 = arith.constant 0 : i32
    return %arg0, %arg1, %arg2, %c0_i32, %c0_i32_0 : i32, i32, i32, i32, i32
  }
}

</mosaic_0001>

<llo_original>
// kernel: tpu_custom_call.1
$region0: #{tpu_custom_call.1}
  #allocation0 [shape = 'u32[]', space=smem, size = 0x4, offset = 0x4, fixed_abs, tag = 'smem constant byte address 0x4 - core index']
  #allocation1 [shape = 'u32[144,128]{1,0:T(1,128)}', space=vmem, size = 0x12000, scoped, tag = 'internal scratch']
  %s0 = inlined_call_operand.hbm [shape: f32[2,4,4,128], index: 0, kind: input, shape index: {}]
  %s1 = inlined_call_operand.hbm [shape: f32[2,4,4,128], index: 1, kind: input, shape index: {}]
  %s2 = inlined_call_operand.hbm [shape: f32[1,2,3,4,128], index: 2, kind: output, shape index: {0}]
  %s3 = inlined_call_operand.hbm [shape: f32[1,2,3,4,128], index: 3, kind: output, shape index: {1}]
  %4 = xla_tuple %s2, %s3
  %s5 = sld [smem:[#allocation0]]
  $region61: #{tpu_custom_call.1} parent=0
    _
  %s7 = ssub.s32 1, %s5
  %s8 = scalar_select 0, %s7, %s5
  $region1: #{tpu_custom_call.1} parent=0
    #allocation2 [shape = 'u8[4096]{0}', space=vmem, size = 0x1000, scoped, tag = 'input window, operand 0']
    #allocation3 [shape = 's32[2]{0}', space=sflag, size = 0x8, scoped, tag = 'scoped memory for tpu_custom_call.1']
    #allocation4 [shape = 's32[2]{0}', space=sflag, size = 0x8, scoped, tag = 'scoped memory for tpu_custom_call.1']
    #allocation5 [shape = 'u8[4096]{0}', space=vmem, size = 0x1000, scoped, tag = 'input window, operand 1']
    #allocation6 [shape = 's32[2]{0}', space=sflag, size = 0x8, scoped, tag = 'scoped memory for tpu_custom_call.1']
    #allocation7 [shape = 'u8[4096]{0}', space=vmem, size = 0x1000, scoped, tag = 'output window, operand 0']
    #allocation8 [shape = 'u8[4096]{0}', space=vmem, size = 0x1000, scoped, tag = 'output window, operand 1']
    #allocation9 [shape = 's32[2]{0}', space=sflag, size = 0x8, scoped, tag = 'scoped memory for tpu_custom_call.1']
    %9 = vsyncpa [#allocation3], 0
    %s10 = scalar_lea.sflag [#allocation3], 1
    %11 = vsyncpa %s10, 0
    %12 = vsyncpa [#allocation6], 0
    %s13 = scalar_lea.sflag [#allocation6], 1
    %14 = vsyncpa %s13, 0
    %15 = vsyncpa [#allocation4], 0
    %s16 = scalar_lea.sflag [#allocation4], 1
    %17 = vsyncpa %s16, 0
    %18 = vsyncpa [#allocation9], 0
    %s19 = scalar_lea.sflag [#allocation9], 1
    %20 = vsyncpa %s19, 0
    loop: start=0, step=1, limit=8
    $region2: #{tpu_custom_call.1} parent=1 // loop_pre_header
      _
    $region3: #{tpu_custom_call.1} parent=1 // loop_header
      %s22 = sphi 0, %s26
      %p23 = scmp.ge.s32.totalorder %s22, 8
      %s29 = sphi 0, %s55
      %s30 = sphi 0, %s51
      %s31 = sphi 0, %s47
      %s32 = sphi 0, %s43
      %s33 = sphi 0, %s29
      %s34 = sphi 0, %s30
      %s35 = sphi 0, %s31
      %s36 = sphi 0, %s32
      %s37 = sphi 0, %s33
      %s38 = sphi 0, %s34
      %s39 = sphi 0, %s35
      %s40 = sphi 0, %s36
      %s66 = sphi 0, %s68
      %s69 = sphi 0, %s66
      %s70 = sphi 0, %s69
      %s86 = sphi 0, %s70
      %s100 = sphi 0, %s102
      %s103 = sphi 0, %s100
      %s104 = sphi 0, %s103
      %s120 = sphi 0, %s104
      %s130 = sphi 0, %s132
      %s133 = sphi 0, %s130
      %s134 = sphi 0, %s133
      %s150 = sphi 0, %s134
      %s160 = sphi 0, %s162
      %s163 = sphi 0, %s160
      %s164 = sphi 0, %s163
      %s180 = sphi 0, %s164
    $region4: #{tpu_custom_call.1} parent=1 // loop_header_branch
      %25 = sbr.rel (%p23) target = $region8
    $region5: #{tpu_custom_call.1} parent=1 // loop_body
      %s27 = ssub.s32 %s22, 1
      %s28 = ssub.s32 %s22, 2
      %s41 = sadd.s32 1, %s32
      %p42 = scmp.ge.s32.totalorder %s41, 1
      %s43 = scalar_select %p42, 0, %s41
      %s44 = sadd.s32 1, %s31
      %s45 = scalar_select %p42, %s44, %s31
      %p46 = scmp.ge.s32.totalorder %s45, 3
      %s47 = scalar_select %p46, 0, %s45
      %s48 = sadd.s32 1, %s30
      %s49 = scalar_select %p46, %s48, %s30
      %p50 = scmp.ge.s32.totalorder %s49, 2
      %s51 = scalar_select %p50, 0, %s49
      %s52 = sadd.s32 1, %s29
      %s53 = scalar_select %p50, %s52, %s29
      %p54 = scmp.ge.s32.totalorder %s53, 1
      %s55 = scalar_select %p54, 0, %s53
      %s56 = sadd.s32 %s31, 1
      %s57 = sadd.s32 %s29, %s32
      %s58 = sadd.s32 %s47, 1
      %s59 = sadd.s32 %s55, %s43
      %s60 = ssub.s32 %s30, %s51
      %s61 = ssub.s32 %s56, %s58
      %s62 = sor.u32 %s60, %s61
      %s63 = ssub.s32 %s57, %s59
      %s64 = sor.u32 %s62, %s63
      %p65 = scmp.eq.s32.totalorder %s64, 0
      %s67 = sadd.s32 %s66, 1
      %s68 = scalar_select %p65, %s66, %s67
      %p71 = pneg %p65
      %p72 = scmp.eq.s32.totalorder %s22, 5
      %p73 = por %p71, %p72
      %p74 = scmp.ne.s32.totalorder %s66, %s69
      %p75 = scmp.eq.s32.totalorder %s22, 0
      %p76 = por %p74, %p75
      %p77 = scmp.ne.s32.totalorder %s66, %s69
      %p78 = scmp.eq.s32.totalorder %s27, 5
      %p79 = por %p77, %p78
      %p80 = scmp.ne.s32.totalorder %s69, %s70
      %p81 = scmp.eq.s32.totalorder %s27, 0
      %p82 = por %p80, %p81
      %p83 = scmp.ne.s32.totalorder %s69, %s70
      %p84 = scmp.eq.s32.totalorder %s28, 5
      %p85 = por %p83, %p84
      %p87 = scmp.ne.s32.totalorder %s70, %s86
      %p88 = scmp.eq.s32.totalorder %s28, 0
      %p89 = por %p87, %p88
      %s90 = sadd.s32 %s31, 1
      %s91 = sadd.s32 %s29, %s32
      %s92 = sadd.s32 %s47, 1
      %s93 = sadd.s32 %s55, %s43
      %s94 = ssub.s32 %s30, %s51
      %s95 = ssub.s32 %s90, %s92
      %s96 = sor.u32 %s94, %s95
      %s97 = ssub.s32 %s91, %s93
      %s98 = sor.u32 %s96, %s97
      %p99 = scmp.eq.s32.totalorder %s98, 0
      %s101 = sadd.s32 %s100, 1
      %s102 = scalar_select %p99, %s100, %s101
      %p105 = pneg %p99
      %p106 = scmp.eq.s32.totalorder %s22, 5
      %p107 = por %p105, %p106
      %p108 = scmp.ne.s32.totalorder %s100, %s103
      %p109 = scmp.eq.s32.totalorder %s22, 0
      %p110 = por %p108, %p109
      %p111 = scmp.ne.s32.totalorder %s100, %s103
      %p112 = scmp.eq.s32.totalorder %s27, 5
      %p113 = por %p111, %p112
      %p114 = scmp.ne.s32.totalorder %s103, %s104
      %p115 = scmp.eq.s32.totalorder %s27, 0
      %p116 = por %p114, %p115
      %p117 = scmp.ne.s32.totalorder %s103, %s104
      %p118 = scmp.eq.s32.totalorder %s28, 5
      %p119 = por %p117, %p118
      %p121 = scmp.ne.s32.totalorder %s104, %s120
      %p122 = scmp.eq.s32.totalorder %s28, 0
      %p123 = por %p121, %p122
      %s124 = ssub.s32 %s29, %s55
      %s125 = ssub.s32 %s30, %s51
      %s126 = sor.u32 %s124, %s125
      %s127 = ssub.s32 %s31, %s47
      %s128 = sor.u32 %s126, %s127
      %p129 = scmp.eq.s32.totalorder %s128, 0
      %s131 = sadd.s32 %s130, 1
      %s132 = scalar_select %p129, %s130, %s131
      %p135 = pneg %p129
      %p136 = scmp.eq.s32.totalorder %s22, 5
      %p137 = por %p135, %p136
      %p138 = scmp.ne.s32.totalorder %s130, %s133
      %p139 = scmp.eq.s32.totalorder %s22, 0
      %p140 = por %p138, %p139
      %p141 = scmp.ne.s32.totalorder %s130, %s133
      %p142 = scmp.eq.s32.totalorder %s27, 5
      %p143 = por %p141, %p142
      %p144 = scmp.ne.s32.totalorder %s133, %s134
      %p145 = scmp.eq.s32.totalorder %s27, 0
      %p146 = por %p144, %p145
      %p147 = scmp.ne.s32.totalorder %s133, %s134
      %p148 = scmp.eq.s32.totalorder %s28, 5
      %p149 = por %p147, %p148
      %p151 = scmp.ne.s32.totalorder %s134, %s150
      %p152 = scmp.eq.s32.totalorder %s28, 0
      %p153 = por %p151, %p152
      %s154 = ssub.s32 %s29, %s55
      %s155 = ssub.s32 %s30, %s51
      %s156 = sor.u32 %s154, %s155
      %s157 = ssub.s32 %s31, %s47
      %s158 = sor.u32 %s156, %s157
      %p159 = scmp.eq.s32.totalorder %s158, 0
      %s161 = sadd.s32 %s160, 1
      %s162 = scalar_select %p159, %s160, %s161
      %p165 = pneg %p159
      %p166 = scmp.eq.s32.totalorder %s22, 5
      %p167 = por %p165, %p166
      %p168 = scmp.ne.s32.totalorder %s160, %s163
      %p169 = scmp.eq.s32.totalorder %s22, 0
      %p170 = por %p168, %p169
      %p171 = scmp.ne.s32.totalorder %s160, %s163
      %p172 = scmp.eq.s32.totalorder %s27, 5
      %p173 = por %p171, %p172
      %p174 = scmp.ne.s32.totalorder %s163, %s164
      %p175 = scmp.eq.s32.totalorder %s27, 0
      %p176 = por %p174, %p175
      %p177 = scmp.ne.s32.totalorder %s163, %s164
      %p178 = scmp.eq.s32.totalorder %s28, 5
      %p179 = por %p177, %p178
      %p181 = scmp.ne.s32.totalorder %s164, %s180
      %p182 = scmp.eq.s32.totalorder %s28, 0
      %p183 = por %p181, %p182
      %p184 = scmp.le.s32.totalorder 1, %s22
      %p185 = scmp.lt.s32.totalorder %s22, 7
      %p186 = pnand %p184, %p185
      %p187 = pneg %p186
      // Predicated region
      $region9: #{tpu_custom_call.1} parent=5 // pred_check
        _
      $region10: #{tpu_custom_call.1} parent=5 // pred_check_branch
        %189 = sbr.rel (%p186) target = $region12
      $region11: #{tpu_custom_call.1} parent=5 // pred_region
        %s190 = ssub.s32 %s22, 1
      $region12: #{tpu_custom_call.1} parent=5 // pred_fallthru
        _
      %p191 = scmp.lt.s32.totalorder %s22, 6
      // Predicated region
      $region13: #{tpu_custom_call.1} parent=5 // pred_check
        %p192 = pneg %p191
      $region14: #{tpu_custom_call.1} parent=5 // pred_check_branch
        %194 = sbr.rel (%p192) target = $region16
      $region15: #{tpu_custom_call.1} parent=5 // pred_region
        // Predicated region
        $region17: #{tpu_custom_call.1} parent=15 // pred_check
          %p195 = pneg %p76
        $region18: #{tpu_custom_call.1} parent=15 // pred_check_branch
          %197 = sbr.rel (%p195) target = $region20
        $region19: #{tpu_custom_call.1} parent=15 // pred_region
          %s198 = sand.u32 %s66, 1
          %s199 = scalar_lea.sflag [#allocation3], %s198
          %s200 = sand.u32 %s66, 1
          %s201 = smul.addr %s200, 4
          %s202 = scalar_lea.vmem [#allocation2], %s201
          %s203 = sadd.s32 %s31, 1
          %s204 = sadd.s32 %s29, %s32
          %s206 = ssub.s32 64, 64
          %207 = vsyncadd %s199, %s206
          %s208 = sadd.s32 %s204, %s203
          %s209 = smul.addr %s30, 4
          %s210 = sadd.s32 %s208, %s209
          %s211 = smul.addr %s210, 64
          %s212 = scalar_lea.hbm %s0, %s211
          %s214 = sshll.u32 %s202, 4
          %s215 = int_to_ptr.vmem [resolvable:$true] %s214
          %217 = dma.hbm_to_vmem [thread:$0]  %s212, 64, %s215, %s199
        $region20: #{tpu_custom_call.1} parent=15 // pred_fallthru
          _
        // Predicated region
        $region21: #{tpu_custom_call.1} parent=15 // pred_check
          %p218 = pneg %p110
        $region22: #{tpu_custom_call.1} parent=15 // pred_check_branch
          %220 = sbr.rel (%p218) target = $region24
        $region23: #{tpu_custom_call.1} parent=15 // pred_region
          %s221 = sand.u32 %s100, 1
          %s222 = scalar_lea.sflag [#allocation6], %s221
          %s223 = sand.u32 %s100, 1
          %s224 = smul.addr %s223, 4
          %s225 = scalar_lea.vmem [#allocation5], %s224
          %s226 = sadd.s32 %s31, 1
          %s227 = sadd.s32 %s29, %s32
          %s229 = ssub.s32 64, 64
          %230 = vsyncadd %s222, %s229
          %s231 = sadd.s32 %s227, %s226
          %s232 = smul.addr %s30, 4
          %s233 = sadd.s32 %s231, %s232
          %s234 = smul.addr %s233, 64
          %s235 = scalar_lea.hbm %s1, %s234
          %s237 = sshll.u32 %s225, 4
          %s238 = int_to_ptr.vmem [resolvable:$true] %s237
          %240 = dma.hbm_to_vmem [thread:$0]  %s235, 64, %s238, %s222
        $region24: #{tpu_custom_call.1} parent=15 // pred_fallthru
          _
      $region16: #{tpu_custom_call.1} parent=5 // pred_fallthru
        _
      %p241 = scmp.le.s32.totalorder 1, %s22
      %p242 = scmp.lt.s32.totalorder %s22, 7
      %p243 = pnand %p241, %p242
      %p244 = pneg %p243
      // Predicated region
      $region25: #{tpu_custom_call.1} parent=5 // pred_check
        _
      $region26: #{tpu_custom_call.1} parent=5 // pred_check_branch
        %246 = sbr.rel (%p243) target = $region28
      $region27: #{tpu_custom_call.1} parent=5 // pred_region
        %s247 = ssub.s32 %s22, 1
        %s248 = sand.u32 %s69, 1
        %s249 = scalar_lea.sflag [#allocation3], %s248
        %s250 = sand.u32 %s69, 1
        %s251 = smul.addr %s250, 4
        %s252 = scalar_lea.vmem [#allocation2], %s251
        // Predicated region
        $region29: #{tpu_custom_call.1} parent=27 // pred_check
          %p253 = pneg %p82
        $region30: #{tpu_custom_call.1} parent=27 // pred_check_branch
          %255 = sbr.rel (%p253) target = $region32
        $region31: #{tpu_custom_call.1} parent=27 // pred_region
          %256 = dma.done %s249, 64
        $region32: #{tpu_custom_call.1} parent=27 // pred_fallthru
          _
        %s257 = sand.u32 %s103, 1
        %s258 = scalar_lea.sflag [#allocation6], %s257
        %s259 = sand.u32 %s103, 1
        %s260 = smul.addr %s259, 4
        %s261 = scalar_lea.vmem [#allocation5], %s260
        // Predicated region
        $region33: #{tpu_custom_call.1} parent=27 // pred_check
          %p262 = pneg %p116
        $region34: #{tpu_custom_call.1} parent=27 // pred_check_branch
          %264 = sbr.rel (%p262) target = $region36
        $region35: #{tpu_custom_call.1} parent=27 // pred_region
          %265 = dma.done %s258, 64
        $region36: #{tpu_custom_call.1} parent=27 // pred_fallthru
          _
        %s266 = sand.u32 %s69, 1
        %s267 = scalar_lea.sflag [#allocation3], %s266
        %s268 = sand.u32 %s69, 1
        %s269 = smul.addr %s268, 4
        %s270 = scalar_lea.vmem [#allocation2], %s269
        %p271 = pneg %p82
        %p272 = pneg %p79
        %s273 = sand.u32 %s103, 1
        %s274 = scalar_lea.sflag [#allocation6], %s273
        %s275 = sand.u32 %s103, 1
        %s276 = smul.addr %s275, 4
        %s277 = scalar_lea.vmem [#allocation5], %s276
        %p278 = pneg %p116
        %p279 = pneg %p113
        %p280 = pneg %p146
        %p281 = pneg %p143
        %s282 = sand.u32 %s133, 1
        %s283 = scalar_lea.sflag [#allocation4], %s282
        %s284 = sand.u32 %s133, 1
        %s285 = smul.addr %s284, 4
        %s286 = scalar_lea.vmem [#allocation7], %s285
        %p287 = pneg %p176
        %p288 = pneg %p173
        %s289 = sand.u32 %s163, 1
        %s290 = scalar_lea.sflag [#allocation9], %s289
        %s291 = sand.u32 %s163, 1
        %s292 = smul.addr %s291, 4
        %s293 = scalar_lea.vmem [#allocation8], %s292
        %s294 = sadd.s32 %s35, 1
        %s295 = sadd.s32 %s33, %s36
        %s296 = sadd.s32 %s35, 1
        %s297 = sadd.s32 %s33, %s36
        %p298 = scmp.eq.s32.totalorder %s36, 0
        // Predicated region
        $region37: #{tpu_custom_call.1} parent=27 // pred_check
          %p299 = pneg %p298
        $region38: #{tpu_custom_call.1} parent=27 // pred_check_branch
          %301 = sbr.rel (%p299) target = $region40
        $region39: #{tpu_custom_call.1} parent=27 // pred_region
          %302 = vst [vmem:[%s286] sm:$0xf] 0.0
          %303 = vst [vmem:[%s293] sm:$0xf] 0.0
        $region40: #{tpu_custom_call.1} parent=27 // pred_fallthru
          _
        %v304 = vld [vmem:[%s252] sm:$0xf]
        %v305 = vld [vmem:[%s261] sm:$0xf]
        %v306 = vmul.f32 %v304, %v305
        %v307 = vmul.f32 %v304, %v304
        %v308 = vadd.f32 %v307, %v305
        %v309 = vld [vmem:[%s286] sm:$0xf]
        %v310 = vadd.f32 %v306, 0.0
        %v311 = vadd.f32 %v309, %v310
        %312 = vst [vmem:[%s286] sm:$0xf] %v311
        %v313 = vld [vmem:[%s293] sm:$0xf]
        %v314 = vadd.f32 %v308, 0.0
        %v315 = vadd.f32 %v313, %v314
        %316 = vst [vmem:[%s293] sm:$0xf] %v315
        %s317 = sand.u32 %s133, 1
        %s318 = scalar_lea.sflag [#allocation4], %s317
        %s319 = sand.u32 %s133, 1
        %s320 = smul.addr %s319, 4
        %s321 = scalar_lea.vmem [#allocation7], %s320
        %s322 = sand.u32 %s163, 1
        %s323 = scalar_lea.sflag [#allocation9], %s322
        %s324 = sand.u32 %s163, 1
        %s325 = smul.addr %s324, 4
        %s326 = scalar_lea.vmem [#allocation8], %s325
        // Predicated region
        $region41: #{tpu_custom_call.1} parent=27 // pred_check
          %p327 = pneg %p143
        $region42: #{tpu_custom_call.1} parent=27 // pred_check_branch
          %329 = sbr.rel (%p327) target = $region44
        $region43: #{tpu_custom_call.1} parent=27 // pred_region
          %s331 = ssub.s32 64, 64
          %332 = vsyncadd %s318, %s331
          %s333 = smul.addr %s34, 3
          %s334 = sadd.s32 %s35, %s333
          %s335 = smul.addr %s33, 6
          %s336 = sadd.s32 %s334, %s335
          %s337 = smul.addr %s336, 64
          %s338 = scalar_lea.hbm %s2, %s337
          %s340 = sshll.u32 %s321, 4
          %s341 = int_to_ptr.vmem [resolvable:$true] %s340
          %343 = dma.vmem_to_hbm [thread:$0]  %s341, 64, %s338, %s318
        $region44: #{tpu_custom_call.1} parent=27 // pred_fallthru
          _
        // Predicated region
        $region45: #{tpu_custom_call.1} parent=27 // pred_check
          %p344 = pneg %p173
        $region46: #{tpu_custom_call.1} parent=27 // pred_check_branch
          %346 = sbr.rel (%p344) target = $region48
        $region47: #{tpu_custom_call.1} parent=27 // pred_region
          %s348 = ssub.s32 64, 64
          %349 = vsyncadd %s323, %s348
          %s350 = smul.addr %s34, 3
          %s351 = sadd.s32 %s35, %s350
          %s352 = smul.addr %s33, 6
          %s353 = sadd.s32 %s351, %s352
          %s354 = smul.addr %s353, 64
          %s355 = scalar_lea.hbm %s3, %s354
          %s357 = sshll.u32 %s326, 4
          %s358 = int_to_ptr.vmem [resolvable:$true] %s357
          %360 = dma.vmem_to_hbm [thread:$0]  %s358, 64, %s355, %s323
        $region48: #{tpu_custom_call.1} parent=27 // pred_fallthru
          _
      $region28: #{tpu_custom_call.1} parent=5 // pred_fallthru
        _
      %p361 = scmp.le.s32.totalorder 2, %s22
      // Predicated region
      $region49: #{tpu_custom_call.1} parent=5 // pred_check
        %p362 = pneg %p361
      $region50: #{tpu_custom_call.1} parent=5 // pred_check_branch
        %364 = sbr.rel (%p362) target = $region52
      $region51: #{tpu_custom_call.1} parent=5 // pred_region
        %s365 = ssub.s32 %s22, 2
        // Predicated region
        $region53: #{tpu_custom_call.1} parent=51 // pred_check
          %p366 = pneg %p149
        $region54: #{tpu_custom_call.1} parent=51 // pred_check_branch
          %368 = sbr.rel (%p366) target = $region56
        $region55: #{tpu_custom_call.1} parent=51 // pred_region
          %s369 = sand.u32 %s134, 1
          %s370 = scalar_lea.sflag [#allocation4], %s369
          %s371 = sand.u32 %s134, 1
          %s372 = smul.addr %s371, 4
          %s373 = scalar_lea.vmem [#allocation7], %s372
          %374 = dma.done %s370, 64
        $region56: #{tpu_custom_call.1} parent=51 // pred_fallthru
          _
        // Predicated region
        $region57: #{tpu_custom_call.1} parent=51 // pred_check
          %p375 = pneg %p179
        $region58: #{tpu_custom_call.1} parent=51 // pred_check_branch
          %377 = sbr.rel (%p375) target = $region60
        $region59: #{tpu_custom_call.1} parent=51 // pred_region
          %s378 = sand.u32 %s164, 1
          %s379 = scalar_lea.sflag [#allocation9], %s378
          %s380 = sand.u32 %s164, 1
          %s381 = smul.addr %s380, 4
          %s382 = scalar_lea.vmem [#allocation8], %s381
          %383 = dma.done %s379, 64
        $region60: #{tpu_custom_call.1} parent=51 // pred_fallthru
          _
      $region52: #{tpu_custom_call.1} parent=5 // pred_fallthru
        _
    $region6: #{tpu_custom_call.1} parent=1 // loop_footer
      %s26 = sadd.s32 1, %s22
    $region7: #{tpu_custom_call.1} parent=1 // loop_footer_branch
      %21 = sbr.rel target = $region3
    $region8: #{tpu_custom_call.1} parent=1 // loop_exit
      _
    %384 = vsyncpa [#allocation3], 1
    %s385 = scalar_lea.sflag [#allocation3], 1
    %386 = vsyncpa %s385, 1
    %387 = vsyncpa [#allocation6], 1
    %s388 = scalar_lea.sflag [#allocation6], 1
    %389 = vsyncpa %s388, 1
    %390 = vsyncpa [#allocation4], 1
    %s391 = scalar_lea.sflag [#allocation4], 1
    %392 = vsyncpa %s391, 1
    %393 = vsyncpa [#allocation9], 1
    %s394 = scalar_lea.sflag [#allocation9], 1
    %395 = vsyncpa %s394, 1

</llo_original>
